<compile_context>
chip_gen: v7x
topology: tpu7x:2x2x1
jax: 0.10.0
libtpu: 0.0.40
codegen_flags: <defaults>
</compile_context>

<pallas_src>
import jax
import jax.numpy as jnp
from jax.experimental import pallas as pl
from jax.experimental.pallas import tpu as pltpu

KSIZE = 7
PAD = 3


def _build_toeplitz(weight, H, W, channels):
    """weight (1, 2, 7, 7) -> T (2*H*W, H*W) such that
    [sum_pool | max_pool] @ T == conv2d([mean_pool, max_pool], weight, padding=3)
    (1/channels is folded into the avg rows so the kernel feeds the raw sum)."""
    w = weight[0].astype(jnp.float32)                        # (2, 7, 7)
    w = w * jnp.array([1.0 / channels, 1.0], jnp.float32)[:, None, None]
    hi = jnp.arange(H)
    wi = jnp.arange(W)
    kh = hi[:, None] - hi[None, :] + PAD                     # (H_in, H_out)
    kw = wi[:, None] - wi[None, :] + PAD                     # (W_in, W_out)
    vh = (kh >= 0) & (kh < KSIZE)
    vw = (kw >= 0) & (kw < KSIZE)
    khc = jnp.clip(kh, 0, KSIZE - 1)
    kwc = jnp.clip(kw, 0, KSIZE - 1)
    # t[ci, hi, wi, ho, wo] = w[ci, hi-ho+3, wi-wo+3], masked to valid taps.
    t = w[:, khc[:, None, :, None], kwc[None, :, None, :]]   # (2, H, W, H, W)
    mask = (vh[:, None, :, None] & vw[None, :, None, :]).astype(jnp.float32)
    t = t * mask[None]
    return t.reshape(2 * H * W, H * W)                       # rows: [sum | max]


def _spatial_attention_kernel(t_ref, b_ref, x_ref, o_ref, pooled_ref):
    hw = pooled_ref.shape[1] // 2

    # Pooling once per batch tile (x block index is constant along the j axis).
    @pl.when(pl.program_id(1) == 0)
    def _():
        x = x_ref[...].astype(jnp.float32)                        # (C, nb, HW)
        pooled_ref[:, :hw] = jnp.sum(x, axis=0).astype(pooled_ref.dtype)
        pooled_ref[:, hw:] = jnp.max(x, axis=0).astype(pooled_ref.dtype)

    # Fused conv: single bf16 MXU matmul with K = 2*HW, f32 accumulation.
    acc = jnp.dot(pooled_ref[...], t_ref[...], preferred_element_type=jnp.float32)
    o_ref[...] = jax.nn.sigmoid(acc + b_ref[0]).astype(o_ref.dtype)


def spatial_attention(x, weight, bias):
    """x: (N, C, H, W) f32; weight: (1, 2, 7, 7) f32; bias: (1,) f32 -> (N, 1, H, W)."""
    N, C, H, W = x.shape
    HW = H * W

    t = _build_toeplitz(weight, H, W, C).astype(jnp.bfloat16)     # (2*HW, HW)
    b = bias.reshape(1).astype(jnp.float32)                       # SMEM scalar

    # ---- chip-aware VMEM budget -------------------------------------------
    try:
        phys = getattr(pltpu.get_tpu_info(), "vmem_capacity_bytes", 64 << 20)
        phys = int(phys) if phys else (64 << 20)
    except Exception:                                             # pragma: no cover
        phys = 64 << 20
    vmem_limit = min(phys // 2, 64 << 20)        # 64 MiB v5e/v6e, 32 MiB v7x
    budget = (vmem_limit * 3) // 4               # headroom for pipeline internals

    # ---- Toeplitz column tile (bounds the resident weight tile) ------------
    t_tile_row_bytes = 2 * HW * 2                # one bf16 row of T (K = 2*HW)
    tn_cap = max(128, ((budget // 4) // (2 * t_tile_row_bytes)) // 128 * 128)
    if HW <= tn_cap or HW % 128 != 0:
        tn = HW
    else:
        tn, d = 128, 256
        while d <= tn_cap and HW % d == 0:
            tn, d = d, d * 2
    grid_j = HW // tn if HW % tn == 0 else 1

    # ---- batch tile from the remaining budget -------------------------------
    per_row = 2 * C * HW * 4 + 2 * HW * 2 + 2 * tn * 4   # x(2x) + pooled + out(2x)
    t_bytes = 2 * (2 * HW) * tn * 2                      # double-buffered T tile
    avail = max(budget - t_bytes, per_row * 8)
    nb_cap = max(8, (avail // per_row) // 8 * 8)

    n_align = ((N + 7) // 8) * 8
    if n_align >= 16:
        # Keep >= 2 batch tiles for medium batches so the 'parallel' grid axis
        # can shard across v7x's two TensorCores (near-free on v5e/v6e).
        nb_cap = min(nb_cap, ((n_align // 2 + 7) // 8) * 8)

    if N <= nb_cap:
        nb, grid_n, n_pad = N, 1, N                      # single unpadded tile
    else:
        nb = nb_cap
        n_pad = ((N + nb - 1) // nb) * nb
        grid_n = n_pad // nb

    # x host layout (C, N_pad, HW): channel axis off the sublanes.
    x_cnhw = jnp.transpose(x.reshape(N, C, HW), (1, 0, 2)).astype(jnp.float32)
    if n_pad != N:
        x_cnhw = jnp.pad(x_cnhw, ((0, 0), (0, n_pad - N), (0, 0)))

    out = pl.pallas_call(
        _spatial_attention_kernel,
        out_shape=jax.ShapeDtypeStruct((n_pad, HW), jnp.float32),
        grid_spec=pltpu.PrefetchScalarGridSpec(
            num_scalar_prefetch=0,
            grid=(grid_n, grid_j),
            in_specs=[
                pl.BlockSpec((2 * HW, tn), lambda n, j: (0, j)),      # fused Toeplitz
                pl.BlockSpec(memory_space=pltpu.MemorySpace.SMEM),    # bias
                pl.BlockSpec((C, nb, HW), lambda n, j: (0, n, 0)),    # x tile
            ],
            out_specs=pl.BlockSpec((nb, tn), lambda n, j: (n, j)),
            scratch_shapes=[pltpu.VMEM((nb, 2 * HW), jnp.bfloat16)],  # pooled
        ),
        compiler_params=pltpu.CompilerParams(
            dimension_semantics=("parallel", "arbitrary"),
            vmem_limit_bytes=vmem_limit,
        ),
    )(t, b, x_cnhw)

    return out[:N].reshape(N, 1, H, W)


def _reference(x, weight, bias):
    # Pure-JAX reference of the PyTorch forward, for verification.
    avg = jnp.mean(x, axis=1, keepdims=True)
    mx = jnp.max(x, axis=1, keepdims=True)
    cat = jnp.concatenate([avg, mx], axis=1)                 # (N, 2, H, W)
    out = jax.lax.conv_general_dilated(
        cat, weight, window_strides=(1, 1), padding=((PAD, PAD), (PAD, PAD)),
        dimension_numbers=("NCHW", "OIHW", "NCHW"),
        precision=jax.lax.Precision.HIGHEST)
    return jax.nn.sigmoid(out + bias.reshape(1, -1, 1, 1))


if __name__ == "__main__":
    key = jax.random.PRNGKey(0)
    kx, kw, kb = jax.random.split(key, 3)

    N, C, H, W = 2, 4, 16, 16
    x = jax.random.normal(kx, (N, C, H, W), dtype=jnp.float32)
    # Deterministic synthetic parameters (shapes match nn.Conv2d(2, 1, 7, padding=3)).
    weight = jax.random.normal(kw, (1, 2, KSIZE, KSIZE), dtype=jnp.float32) * 0.1
    bias = jax.random.normal(kb, (1,), dtype=jnp.float32) * 0.1

    out = jax.block_until_ready(spatial_attention(x, weight, bias))
    ref = jax.block_until_ready(_reference(x, weight, bias))

    assert out.shape == (N, 1, H, W), out.shape
    # Tolerance covers bf16 matmul operands (f32 accumulation) over the 98
    # effective taps; the saturating sigmoid keeps post-activation error small.
    err = float(jnp.max(jnp.abs(out - ref)))
    assert err < 1e-2, err
    print("KERNEL_OK")
</pallas_src>

<mosaic_0001>
module attributes {stable_mosaic.version = 11 : i64} {
  func.func @_spatial_attention_kernel(%arg0: i32, %arg1: i32, %arg2: memref<512x256xbf16, #tpu.memory_space<vmem>>, %arg3: memref<1xf32, #tpu.memory_space<smem>>, %arg4: memref<4x2x256xf32, #tpu.memory_space<vmem>>, %arg5: memref<2x256xf32, #tpu.memory_space<vmem>>, %arg6: memref<2x512xbf16, #tpu.memory_space<vmem>>) attributes {dimension_semantics = [#tpu.dimension_semantics<parallel>, #tpu.dimension_semantics<arbitrary>], iteration_bounds = array<i64: 1, 1>, scalar_prefetch = 0 : i64, scratch_operands = 1 : i64, tpu.core_type = #tpu.core_type<tc>, window_params = [{transform_indices = @transform_0, window_bounds = array<i64: 512, 256>}, {transform_indices = @transform_1, window_bounds = array<i64: 1>}, {transform_indices = @transform_2, window_bounds = array<i64: 4, 2, 256>}, {transform_indices = @transform_3, window_bounds = array<i64: 2, 256>}]} {
    %c0_i32 = arith.constant 0 : i32
    %0 = arith.cmpi eq, %arg1, %c0_i32 : i32
    %1 = arith.extui %0 : i1 to i32
    %c0_i32_0 = arith.constant 0 : i32
    %2 = arith.cmpi ne, %1, %c0_i32_0 : i32
    scf.if %2 {
      %c0_8 = arith.constant 0 : index
      %c0_9 = arith.constant 0 : index
      %c0_10 = arith.constant 0 : index
      %15 = vector.load %arg4[%c0_8, %c0_9, %c0_10] : memref<4x2x256xf32, #tpu.memory_space<vmem>>, vector<4x2x256xf32>
      %cst_11 = arith.constant dense<0.000000e+00> : vector<2x256xf32>
      %16 = vector.multi_reduction <add>, %15, %cst_11 [0] : vector<4x2x256xf32> to vector<2x256xf32>
      %17 = arith.truncf %16 : vector<2x256xf32> to vector<2x256xbf16>
      %c0_12 = arith.constant 0 : index
      %c0_13 = arith.constant 0 : index
      %18 = vector.load %arg6[%c0_12, %c0_13] : memref<2x512xbf16, #tpu.memory_space<vmem>>, vector<2x256xbf16>
      tpu.vector_store %arg6[%c0_12, %c0_13], %17 {strides = array<i32>} : memref<2x512xbf16, #tpu.memory_space<vmem>>, vector<2x256xbf16>,
      %cst_14 = arith.constant dense<0xFF800000> : vector<2x256xf32>
      %19 = vector.multi_reduction <maximumf>, %15, %cst_14 [0] : vector<4x2x256xf32> to vector<2x256xf32>
      %20 = arith.truncf %19 : vector<2x256xf32> to vector<2x256xbf16>
      %c0_15 = arith.constant 0 : index
      %c256 = arith.constant 256 : index
      %21 = vector.load %arg6[%c0_15, %c256] : memref<2x512xbf16, #tpu.memory_space<vmem>>, vector<2x256xbf16>
      tpu.vector_store %arg6[%c0_15, %c256], %20 {strides = array<i32>} : memref<2x512xbf16, #tpu.memory_space<vmem>>, vector<2x256xbf16>,
    } else {
    }
    %c0 = arith.constant 0 : index
    %c0_1 = arith.constant 0 : index
    %3 = vector.load %arg6[%c0, %c0_1] : memref<2x512xbf16, #tpu.memory_space<vmem>>, vector<2x512xbf16>
    %c0_2 = arith.constant 0 : index
    %c0_3 = arith.constant 0 : index
    %4 = vector.load %arg2[%c0_2, %c0_3] : memref<512x256xbf16, #tpu.memory_space<vmem>>, vector<512x256xbf16>
    %cst = arith.constant dense<0.000000e+00> : vector<2x256xf32>
    %5 = tpu.matmul %3, %4, %cst {dimension_numbers = #tpu.dot_dimension_numbers<[1], [0], [0], [1], [0, 0, 1, 1], [], []>} : vector<2x512xbf16>, vector<512x256xbf16>, vector<2x256xf32> -> vector<2x256xf32>
    %c0_4 = arith.constant 0 : index
    %6 = memref.load %arg3[%c0_4] : memref<1xf32, #tpu.memory_space<smem>>
    %7 = vector.broadcast %6 : f32 to vector<2x256xf32>
    %8 = arith.addf %5, %7 : vector<2x256xf32>
    %9 = arith.negf %8 : vector<2x256xf32>
    %10 = math.exp %9 : vector<2x256xf32>
    %cst_5 = arith.constant 1.000000e+00 : f32
    %11 = vector.broadcast %cst_5 : f32 to vector<2x256xf32>
    %12 = arith.addf %11, %10 : vector<2x256xf32>
    %13 = arith.divf %11, %12 : vector<2x256xf32>
    %c0_6 = arith.constant 0 : index
    %c0_7 = arith.constant 0 : index
    %14 = vector.load %arg5[%c0_6, %c0_7] : memref<2x256xf32, #tpu.memory_space<vmem>>, vector<2x256xf32>
    tpu.vector_store %arg5[%c0_6, %c0_7], %13 {strides = array<i32>} : memref<2x256xf32, #tpu.memory_space<vmem>>, vector<2x256xf32>,
    return
  }
  func.func @transform_0(%arg0: i32, %arg1: i32) -> (i32, i32) {
    %c0_i32 = arith.constant 0 : i32
    %c0_i32_0 = arith.constant 0 : i32
    return %c0_i32, %arg1 : i32, i32
  }
  func.func @transform_1(%arg0: i32, %arg1: i32) -> i32 {
    %c0_i32 = arith.constant 0 : i32
    %c0_i32_0 = arith.constant 0 : i32
    return %c0_i32 : i32
  }
  func.func @transform_2(%arg0: i32, %arg1: i32) -> (i32, i32, i32) {
    %c0_i32 = arith.constant 0 : i32
    %c0_i32_0 = arith.constant 0 : i32
    %c0_i32_1 = arith.constant 0 : i32
    return %c0_i32, %arg0, %c0_i32_0 : i32, i32, i32
  }
  func.func @transform_3(%arg0: i32, %arg1: i32) -> (i32, i32) {
    %c0_i32 = arith.constant 0 : i32
    return %arg0, %arg1 : i32, i32
  }
}

</mosaic_0001>

<llo_original>
// kernel: tpu_custom_call.1
$region0: #{tpu_custom_call.1}
  #allocation0 [shape = 'u32[]', space=smem, size = 0x4, offset = 0x4, fixed_abs, tag = 'smem constant byte address 0x4 - core index']
  #allocation1 [shape = 'u32[144,128]{1,0:T(1,128)}', space=vmem, size = 0x12000, scoped, tag = 'internal scratch']
  #allocation2 [shape = 'bf16[2,512]{1,0:T(2,128)(2,1)}', space=vmem, size = 0x800, scoped, tag = 'scratch operand']
  #allocation3 [shape = 'f32[1]{0:T(128)S(6)}', space=smem, size = 0x200, scoped, tag = 'scoped memory for tpu_custom_call.1']
  %s0 = inlined_call_operand.hbm [shape: bf16[512,256], index: 0, kind: input, shape index: {}]
  %s1 = inlined_call_operand.<no memory space> [shape: f32[1], index: 1, kind: input, shape index: {}]
  %s2 = inlined_call_operand.hbm [shape: f32[4,2,256], index: 2, kind: input, shape index: {}]
  %s3 = inlined_call_operand.hbm [shape: f32[2,256], index: 3, kind: output, shape index: {}]
  %s4 = sld [smem:[#allocation0]]
  $region34: #{tpu_custom_call.1} parent=0
    _
  %s6 = ssub.s32 1, %s4
  %s7 = scalar_select 0, %s6, %s4
  %8 = sst [smem:[#allocation3]] %s1
  $region1: #{tpu_custom_call.1} parent=0
    #allocation4 [shape = 'u8[262144]{0}', space=vmem, size = 0x40000, scoped, tag = 'input window, operand 0, single buffered']
    #allocation5 [shape = 's32[1]{0}', space=sflag, size = 0x4, scoped, tag = 'scoped memory for tpu_custom_call.1']
    #allocation6 [shape = 's32[1]{0}', space=sflag, size = 0x4, scoped, tag = 'scoped memory for tpu_custom_call.1']
    #allocation7 [shape = 'u8[8192]{0}', space=vmem, size = 0x2000, scoped, tag = 'input window, operand 2, single buffered']
    #allocation8 [shape = 's32[1]{0}', space=sflag, size = 0x4, scoped, tag = 'scoped memory for tpu_custom_call.1']
    #allocation9 [shape = 'u8[2048]{0}', space=vmem, size = 0x800, scoped, tag = 'output window, operand 0, single buffered']
    %9 = vsyncpa [#allocation5], 0
    %10 = vsyncpa [#allocation8], 0
    %11 = vsyncpa [#allocation6], 0
    // Predicated region
    $region2: #{tpu_custom_call.1} parent=1 // pred_check
      _
    $region3: #{tpu_custom_call.1} parent=1 // pred_check_branch
      %13 = sbr.rel (0) target = $region5
    $region4: #{tpu_custom_call.1} parent=1 // pred_region
      %s15 = ssub.s32 8192, 8192
      %16 = vsyncadd [#allocation5], %s15
      %s17 = sshll.u32 [#allocation4], 4
      %s18 = int_to_ptr.vmem [resolvable:$true] %s17
      %23 = dma.hbm_to_vmem [thread:$0]  %s0, 8192, %s18, [#allocation5], 128, 128, 8
    $region5: #{tpu_custom_call.1} parent=1 // pred_fallthru
      _
    // Predicated region
    $region6: #{tpu_custom_call.1} parent=1 // pred_check
      _
    $region7: #{tpu_custom_call.1} parent=1 // pred_check_branch
      %25 = sbr.rel (0) target = $region9
    $region8: #{tpu_custom_call.1} parent=1 // pred_region
      _
    $region9: #{tpu_custom_call.1} parent=1 // pred_fallthru
      _
    // Predicated region
    $region10: #{tpu_custom_call.1} parent=1 // pred_check
      _
    $region11: #{tpu_custom_call.1} parent=1 // pred_check_branch
      %27 = sbr.rel (0) target = $region13
    $region12: #{tpu_custom_call.1} parent=1 // pred_region
      %s29 = ssub.s32 256, 256
      %30 = vsyncadd [#allocation8], %s29
      %s31 = sshll.u32 [#allocation7], 4
      %s32 = int_to_ptr.vmem [resolvable:$true] %s31
      %37 = dma.hbm_to_vmem [thread:$0]  %s2, 256, %s32, [#allocation8], 64, 64, 4
    $region13: #{tpu_custom_call.1} parent=1 // pred_fallthru
      _
    // Predicated region
    $region14: #{tpu_custom_call.1} parent=1 // pred_check
      _
    $region15: #{tpu_custom_call.1} parent=1 // pred_check_branch
      %39 = sbr.rel (0) target = $region17
    $region16: #{tpu_custom_call.1} parent=1 // pred_region
      %40 = dma.done [#allocation5], 8192
    $region17: #{tpu_custom_call.1} parent=1 // pred_fallthru
      _
    // Predicated region
    $region18: #{tpu_custom_call.1} parent=1 // pred_check
      _
    $region19: #{tpu_custom_call.1} parent=1 // pred_check_branch
      %42 = sbr.rel (0) target = $region21
    $region20: #{tpu_custom_call.1} parent=1 // pred_region
      %43 = dma.done [#allocation8], 256
    $region21: #{tpu_custom_call.1} parent=1 // pred_fallthru
      _
    %p44 = scmp.eq.s32.totalorder 0, 0
    // Predicated region
    $region22: #{tpu_custom_call.1} parent=1 // pred_check
      %p45 = pneg %p44
    $region23: #{tpu_custom_call.1} parent=1 // pred_check_branch
      %47 = sbr.rel (%p45) target = $region25
    $region24: #{tpu_custom_call.1} parent=1 // pred_region
      %v48 = vld [vmem:[#allocation7] sm:$0xf]
      %v49 = vld [vmem:[#allocation7 + $0x4] sm:$0xf]
      %v50 = vld [vmem:[#allocation7 + $0x8] sm:$0xf]
      %v51 = vld [vmem:[#allocation7 + $0xc] sm:$0xf]
      %v57 = vunpack.c.l.s4 1983009808
      %v58 = vunpack.c.0.s8 %v57
      %v59 = vlaneseq
      %v60 = vshrl.u32 %v59, 7
      %v61 = vsub.s32 %v58, %v60
      %v62 = vrot.slane %v48, %v61
      %v63 = vcombine.high %v62, %v62
      %v65 = vunpack.c.l.s4 1983009808
      %v66 = vunpack.c.0.s8 %v65
      %v67 = vlaneseq
      %v68 = vshrl.u32 %v67, 7
      %v69 = vsub.s32 %v66, %v68
      %v70 = vrot.slane %v49, %v69
      %v71 = vcombine.high %v70, %v70
      %v73 = vunpack.c.l.s4 1983009808
      %v74 = vunpack.c.0.s8 %v73
      %v75 = vlaneseq
      %v76 = vshrl.u32 %v75, 7
      %v77 = vsub.s32 %v74, %v76
      %v78 = vrot.slane %v50, %v77
      %v79 = vcombine.high %v78, %v78
      %v81 = vunpack.c.l.s4 1983009808
      %v82 = vunpack.c.0.s8 %v81
      %v83 = vlaneseq
      %v84 = vshrl.u32 %v83, 7
      %v85 = vsub.s32 %v82, %v84
      %v86 = vrot.slane %v51, %v85
      %v87 = vcombine.high %v86, %v86
      %vm96 = vcmask 1041408
      %v97 = vsel %vm96, %v62, 0.0
      %v98 = vsel %vm96, %v70, 0.0
      %v99 = vadd.f32 %v97, %v98
      %v100 = vsel %vm96, %v78, 0.0
      %v101 = vadd.f32 %v99, %v100
      %v102 = vsel %vm96, %v86, 0.0
      %v103 = vadd.f32 %v101, %v102
      %v104 = vsel %vm96, %v63, 0.0
      %v105 = vsel %vm96, %v71, 0.0
      %v106 = vadd.f32 %v104, %v105
      %v107 = vsel %vm96, %v79, 0.0
      %v108 = vadd.f32 %v106, %v107
      %v109 = vsel %vm96, %v87, 0.0
      %v110 = vadd.f32 %v108, %v109
      %v111 = vpack.c.bf16 %v103, %v103
      %v112 = vpack.c.bf16 %v110, %v110
      %v115 = vcombine.low %v111, %v112
      %v117 = vunpack.c.l.s4 1966171168
      %v118 = vunpack.c.0.s8 %v117
      %v119 = vlaneseq
      %v120 = vshrl.u32 %v119, 7
      %v121 = vsub.s32 %v118, %v120
      %v122 = vrot.slane %v115, %v121
      %v124 = vunpack.c.l.s4 1966171168
      %v125 = vunpack.c.0.s8 %v124
      %v126 = vlaneseq
      %v127 = vshrl.u32 %v126, 7
      %v128 = vsub.s32 %v125, %v127
      %v129 = vrot.slane %v122, %v128
      %131 = vst [vmem:[#allocation2] sm:$0x3] %v129
      %vm132 = vcmask 1043458
      %vm133 = vmor %vm132, %vm96
      %v134 = vsel %vm133, %v48, -inf
      %v135 = vsel %vm133, %v49, -inf
      %v136 = vsel %vm133, %v50, -inf
      %v137 = vsel %vm133, %v51, -inf
      %v138 = vmax.f32 %v134, %v135
      %v139 = vmax.f32 %v136, %v137
      %v140 = vmax.f32 %v138, %v139
      %v143 = vunpack.c.l.s4 1983009808
      %v144 = vunpack.c.0.s8 %v143
      %v145 = vlaneseq
      %v146 = vshrl.u32 %v145, 7
      %v147 = vsub.s32 %v144, %v146
      %v148 = vrot.slane %v140, %v147
      %v149 = vcombine.high %v148, %v148
      %v152 = vpack.c.bf16 %v148, %v148
      %v153 = vpack.c.bf16 %v149, %v149
      %v156 = vcombine.low %v152, %v153
      %v158 = vunpack.c.l.s4 1966171168
      %v159 = vunpack.c.0.s8 %v158
      %v160 = vlaneseq
      %v161 = vshrl.u32 %v160, 7
      %v162 = vsub.s32 %v159, %v161
      %v163 = vrot.slane %v156, %v162
      %v165 = vunpack.c.l.s4 1966171168
      %v166 = vunpack.c.0.s8 %v165
      %v167 = vlaneseq
      %v168 = vshrl.u32 %v167, 7
      %v169 = vsub.s32 %v166, %v168
      %v170 = vrot.slane %v163, %v169
      %172 = vst [vmem:[#allocation2 + $0x2] sm:$0x3] %v170
    $region25: #{tpu_custom_call.1} parent=1 // pred_fallthru
      _
    %v173 = vld [vmem:[#allocation2] sm:$0xf]
    %v174 = vld [vmem:[#allocation4] sm:$0xff]
    %v175 = vld [vmem:[#allocation4 + $0x8] sm:$0xff]
    %v176 = vld [vmem:[#allocation4 + $0x10] sm:$0xff]
    %v177 = vld [vmem:[#allocation4 + $0x18] sm:$0xff]
    %v178 = vld [vmem:[#allocation4 + $0x20] sm:$0xff]
    %v179 = vld [vmem:[#allocation4 + $0x28] sm:$0xff]
    %v180 = vld [vmem:[#allocation4 + $0x30] sm:$0xff]
    %v181 = vld [vmem:[#allocation4 + $0x38] sm:$0xff]
    %v182 = vld [vmem:[#allocation4 + $0x40] sm:$0xff]
    %v183 = vld [vmem:[#allocation4 + $0x48] sm:$0xff]
    %v184 = vld [vmem:[#allocation4 + $0x50] sm:$0xff]
    %v185 = vld [vmem:[#allocation4 + $0x58] sm:$0xff]
    %v186 = vld [vmem:[#allocation4 + $0x60] sm:$0xff]
    %v187 = vld [vmem:[#allocation4 + $0x68] sm:$0xff]
    %v188 = vld [vmem:[#allocation4 + $0x70] sm:$0xff]
    %v189 = vld [vmem:[#allocation4 + $0x78] sm:$0xff]
    %v190 = vld [vmem:[#allocation4 + $0x80] sm:$0xff]
    %v191 = vld [vmem:[#allocation4 + $0x88] sm:$0xff]
    %v192 = vld [vmem:[#allocation4 + $0x90] sm:$0xff]
    %v193 = vld [vmem:[#allocation4 + $0x98] sm:$0xff]
    %v194 = vld [vmem:[#allocation4 + $0xa0] sm:$0xff]
    %v195 = vld [vmem:[#allocation4 + $0xa8] sm:$0xff]
    %v196 = vld [vmem:[#allocation4 + $0xb0] sm:$0xff]
    %v197 = vld [vmem:[#allocation4 + $0xb8] sm:$0xff]
    %v198 = vld [vmem:[#allocation4 + $0xc0] sm:$0xff]
    %v199 = vld [vmem:[#allocation4 + $0xc8] sm:$0xff]
    %v200 = vld [vmem:[#allocation4 + $0xd0] sm:$0xff]
    %v201 = vld [vmem:[#allocation4 + $0xd8] sm:$0xff]
    %v202 = vld [vmem:[#allocation4 + $0xe0] sm:$0xff]
    %v203 = vld [vmem:[#allocation4 + $0xe8] sm:$0xff]
    %v204 = vld [vmem:[#allocation4 + $0xf0] sm:$0xff]
    %v205 = vld [vmem:[#allocation4 + $0xf8] sm:$0xff]
    %v206 = vld [vmem:[#allocation4 + $0x100] sm:$0xff]
    %v207 = vld [vmem:[#allocation4 + $0x108] sm:$0xff]
    %v208 = vld [vmem:[#allocation4 + $0x110] sm:$0xff]
    %v209 = vld [vmem:[#allocation4 + $0x118] sm:$0xff]
    %v210 = vld [vmem:[#allocation4 + $0x120] sm:$0xff]
    %v211 = vld [vmem:[#allocation4 + $0x128] sm:$0xff]
    %v212 = vld [vmem:[#allocation4 + $0x130] sm:$0xff]
    %v213 = vld [vmem:[#allocation4 + $0x138] sm:$0xff]
    %v214 = vld [vmem:[#allocation4 + $0x140] sm:$0xff]
    %v215 = vld [vmem:[#allocation4 + $0x148] sm:$0xff]
    %v216 = vld [vmem:[#allocation4 + $0x150] sm:$0xff]
    %v217 = vld [vmem:[#allocation4 + $0x158] sm:$0xff]
    %v218 = vld [vmem:[#allocation4 + $0x160] sm:$0xff]
    %v219 = vld [vmem:[#allocation4 + $0x168] sm:$0xff]
    %v220 = vld [vmem:[#allocation4 + $0x170] sm:$0xff]
    %v221 = vld [vmem:[#allocation4 + $0x178] sm:$0xff]
    %v222 = vld [vmem:[#allocation4 + $0x180] sm:$0xff]
    %v223 = vld [vmem:[#allocation4 + $0x188] sm:$0xff]
    %v224 = vld [vmem:[#allocation4 + $0x190] sm:$0xff]
    %v225 = vld [vmem:[#allocation4 + $0x198] sm:$0xff]
    %v226 = vld [vmem:[#allocation4 + $0x1a0] sm:$0xff]
    %v227 = vld [vmem:[#allocation4 + $0x1a8] sm:$0xff]
    %v228 = vld [vmem:[#allocation4 + $0x1b0] sm:$0xff]
    %v229 = vld [vmem:[#allocation4 + $0x1b8] sm:$0xff]
    %v230 = vld [vmem:[#allocation4 + $0x1c0] sm:$0xff]
    %v231 = vld [vmem:[#allocation4 + $0x1c8] sm:$0xff]
    %v232 = vld [vmem:[#allocation4 + $0x1d0] sm:$0xff]
    %v233 = vld [vmem:[#allocation4 + $0x1d8] sm:$0xff]
    %v234 = vld [vmem:[#allocation4 + $0x1e0] sm:$0xff]
    %v235 = vld [vmem:[#allocation4 + $0x1e8] sm:$0xff]
    %v236 = vld [vmem:[#allocation4 + $0x1f0] sm:$0xff]
    %v237 = vld [vmem:[#allocation4 + $0x1f8] sm:$0xff]
    %s238 = sld [smem:[#allocation3]]
    %v239 = vstv %s238
    %v242 = vunpack.c.l.s4 1966171168
    %v243 = vunpack.c.0.s8 %v242
    %v244 = vlaneseq
    %v245 = vshrl.u32 %v244, 7
    %v246 = vsub.s32 %v243, %v245
    %v247 = vrot.slane %v173, %v246
    %v248 = vcombine.high %v247, %v247
    %v250 = vunpack.c.l.s4 1966171168
    %v251 = vunpack.c.0.s8 %v250
    %v252 = vlaneseq
    %v253 = vshrl.u32 %v252, 7
    %v254 = vsub.s32 %v251, %v253
    %v255 = vrot.slane %v247, %v254
    %v257 = vunpack.c.l.s4 1966171168
    %v258 = vunpack.c.0.s8 %v257
    %v259 = vlaneseq
    %v260 = vshrl.u32 %v259, 7
    %v261 = vsub.s32 %v258, %v260
    %v262 = vrot.slane %v248, %v261
    %v263 = vcombine.high %v255, %v255
    %v264 = vcombine.high %v262, %v262
    %v333 = vunpack.c.l.b16 %v174
    %v334 = vunpack.c.h.b16 %v174
    %v335 = vunpack.c.l.b16 %v175
    %v336 = vunpack.c.h.b16 %v175
    %v337 = vunpack.c.l.b16 %v176
    %v338 = vunpack.c.h.b16 %v176
    %v339 = vunpack.c.l.b16 %v177
    %v340 = vunpack.c.h.b16 %v177
    %v341 = vunpack.c.l.b16 %v178
    %v342 = vunpack.c.h.b16 %v178
    %v343 = vunpack.c.l.b16 %v179
    %v344 = vunpack.c.h.b16 %v179
    %v345 = vunpack.c.l.b16 %v180
    %v346 = vunpack.c.h.b16 %v180
    %v347 = vunpack.c.l.b16 %v181
    %v348 = vunpack.c.h.b16 %v181
    %v349 = vunpack.c.l.b16 %v182
    %v350 = vunpack.c.h.b16 %v182
    %v351 = vunpack.c.l.b16 %v183
    %v352 = vunpack.c.h.b16 %v183
    %v353 = vunpack.c.l.b16 %v184
    %v354 = vunpack.c.h.b16 %v184
    %v355 = vunpack.c.l.b16 %v185
    %v356 = vunpack.c.h.b16 %v185
    %v357 = vunpack.c.l.b16 %v186
    %v358 = vunpack.c.h.b16 %v186
    %v359 = vunpack.c.l.b16 %v187
    %v360 = vunpack.c.h.b16 %v187
    %v361 = vunpack.c.l.b16 %v188
    %v362 = vunpack.c.h.b16 %v188
    %v363 = vunpack.c.l.b16 %v189
    %v364 = vunpack.c.h.b16 %v189
    %v365 = vunpack.c.l.b16 %v190
    %v366 = vunpack.c.h.b16 %v190
    %v367 = vunpack.c.l.b16 %v191
    %v368 = vunpack.c.h.b16 %v191
    %v369 = vunpack.c.l.b16 %v192
    %v370 = vunpack.c.h.b16 %v192
    %v371 = vunpack.c.l.b16 %v193
    %v372 = vunpack.c.h.b16 %v193
    %v373 = vunpack.c.l.b16 %v194
    %v374 = vunpack.c.h.b16 %v194
    %v375 = vunpack.c.l.b16 %v195
    %v376 = vunpack.c.h.b16 %v195
    %v377 = vunpack.c.l.b16 %v196
    %v378 = vunpack.c.h.b16 %v196
    %v379 = vunpack.c.l.b16 %v197
    %v380 = vunpack.c.h.b16 %v197
    %v381 = vunpack.c.l.b16 %v198
    %v382 = vunpack.c.h.b16 %v198
    %v383 = vunpack.c.l.b16 %v199
    %v384 = vunpack.c.h.b16 %v199
    %v385 = vunpack.c.l.b16 %v200
    %v386 = vunpack.c.h.b16 %v200
    %v387 = vunpack.c.l.b16 %v201
    %v388 = vunpack.c.h.b16 %v201
    %v389 = vunpack.c.l.b16 %v202
    %v390 = vunpack.c.h.b16 %v202
    %v391 = vunpack.c.l.b16 %v203
    %v392 = vunpack.c.h.b16 %v203
    %v393 = vunpack.c.l.b16 %v204
    %v394 = vunpack.c.h.b16 %v204
    %v395 = vunpack.c.l.b16 %v205
    %v396 = vunpack.c.h.b16 %v205
    %v397 = vunpack.c.l.b16 %v206
    %v398 = vunpack.c.h.b16 %v206
    %v399 = vunpack.c.l.b16 %v207
    %v400 = vunpack.c.h.b16 %v207
    %v401 = vunpack.c.l.b16 %v208
    %v402 = vunpack.c.h.b16 %v208
    %v403 = vunpack.c.l.b16 %v209
    %v404 = vunpack.c.h.b16 %v209
    %v405 = vunpack.c.l.b16 %v210
    %v406 = vunpack.c.h.b16 %v210
    %v407 = vunpack.c.l.b16 %v211
    %v408 = vunpack.c.h.b16 %v211
    %v409 = vunpack.c.l.b16 %v212
    %v410 = vunpack.c.h.b16 %v212
    %v411 = vunpack.c.l.b16 %v213
    %v412 = vunpack.c.h.b16 %v213
    %v413 = vunpack.c.l.b16 %v214
    %v414 = vunpack.c.h.b16 %v214
    %v415 = vunpack.c.l.b16 %v215
    %v416 = vunpack.c.h.b16 %v215
    %v417 = vunpack.c.l.b16 %v216
    %v418 = vunpack.c.h.b16 %v216
    %v419 = vunpack.c.l.b16 %v217
    %v420 = vunpack.c.h.b16 %v217
    %v421 = vunpack.c.l.b16 %v218
    %v422 = vunpack.c.h.b16 %v218
    %v423 = vunpack.c.l.b16 %v219
    %v424 = vunpack.c.h.b16 %v219
    %v425 = vunpack.c.l.b16 %v220
    %v426 = vunpack.c.h.b16 %v220
    %v427 = vunpack.c.l.b16 %v221
    %v428 = vunpack.c.h.b16 %v221
    %v429 = vunpack.c.l.b16 %v222
    %v430 = vunpack.c.h.b16 %v222
    %v431 = vunpack.c.l.b16 %v223
    %v432 = vunpack.c.h.b16 %v223
    %v433 = vunpack.c.l.b16 %v224
    %v434 = vunpack.c.h.b16 %v224
    %v435 = vunpack.c.l.b16 %v225
    %v436 = vunpack.c.h.b16 %v225
    %v437 = vunpack.c.l.b16 %v226
    %v438 = vunpack.c.h.b16 %v226
    %v439 = vunpack.c.l.b16 %v227
    %v440 = vunpack.c.h.b16 %v227
    %v441 = vunpack.c.l.b16 %v228
    %v442 = vunpack.c.h.b16 %v228
    %v443 = vunpack.c.l.b16 %v229
    %v444 = vunpack.c.h.b16 %v229
    %v445 = vunpack.c.l.b16 %v230
    %v446 = vunpack.c.h.b16 %v230
    %v447 = vunpack.c.l.b16 %v231
    %v448 = vunpack.c.h.b16 %v231
    %v449 = vunpack.c.l.b16 %v232
    %v450 = vunpack.c.h.b16 %v232
    %v451 = vunpack.c.l.b16 %v233
    %v452 = vunpack.c.h.b16 %v233
    %v453 = vunpack.c.l.b16 %v234
    %v454 = vunpack.c.h.b16 %v234
    %v455 = vunpack.c.l.b16 %v235
    %v456 = vunpack.c.h.b16 %v235
    %v457 = vunpack.c.l.b16 %v236
    %v458 = vunpack.c.h.b16 %v236
    %v459 = vunpack.c.l.b16 %v237
    %v460 = vunpack.c.h.b16 %v237
    %v461 = vpack.c.b16 %v335, %v333
    %v462 = vpack.c.b16 %v336, %v334
    %v463 = vpack.c.b16 %v339, %v337
    %v464 = vpack.c.b16 %v340, %v338
    %v465 = vpack.c.b16 %v343, %v341
    %v466 = vpack.c.b16 %v344, %v342
    %v467 = vpack.c.b16 %v347, %v345
    %v468 = vpack.c.b16 %v348, %v346
    %v469 = vpack.c.b16 %v351, %v349
    %v470 = vpack.c.b16 %v352, %v350
    %v471 = vpack.c.b16 %v355, %v353
    %v472 = vpack.c.b16 %v356, %v354
    %v473 = vpack.c.b16 %v359, %v357
    %v474 = vpack.c.b16 %v360, %v358
    %v475 = vpack.c.b16 %v363, %v361
    %v476 = vpack.c.b16 %v364, %v362
    %v477 = vpack.c.b16 %v367, %v365
    %v478 = vpack.c.b16 %v368, %v366
    %v479 = vpack.c.b16 %v371, %v369
    %v480 = vpack.c.b16 %v372, %v370
    %v481 = vpack.c.b16 %v375, %v373
    %v482 = vpack.c.b16 %v376, %v374
    %v483 = vpack.c.b16 %v379, %v377
    %v484 = vpack.c.b16 %v380, %v378
    %v485 = vpack.c.b16 %v383, %v381
    %v486 = vpack.c.b16 %v384, %v382
    %v487 = vpack.c.b16 %v387, %v385
    %v488 = vpack.c.b16 %v388, %v386
    %v489 = vpack.c.b16 %v391, %v389
    %v490 = vpack.c.b16 %v392, %v390
    %v491 = vpack.c.b16 %v395, %v393
    %v492 = vpack.c.b16 %v396, %v394
    %v493 = vpack.c.b16 %v399, %v397
    %v494 = vpack.c.b16 %v400, %v398
    %v495 = vpack.c.b16 %v403, %v401
    %v496 = vpack.c.b16 %v404, %v402
    %v497 = vpack.c.b16 %v407, %v405
    %v498 = vpack.c.b16 %v408, %v406
    %v499 = vpack.c.b16 %v411, %v409
    %v500 = vpack.c.b16 %v412, %v410
    %v501 = vpack.c.b16 %v415, %v413
    %v502 = vpack.c.b16 %v416, %v414
    %v503 = vpack.c.b16 %v419, %v417
    %v504 = vpack.c.b16 %v420, %v418
    %v505 = vpack.c.b16 %v423, %v421
    %v506 = vpack.c.b16 %v424, %v422
    %v507 = vpack.c.b16 %v427, %v425
    %v508 = vpack.c.b16 %v428, %v426
    %v509 = vpack.c.b16 %v431, %v429
    %v510 = vpack.c.b16 %v432, %v430
    %v511 = vpack.c.b16 %v435, %v433
    %v512 = vpack.c.b16 %v436, %v434
    %v513 = vpack.c.b16 %v439, %v437
    %v514 = vpack.c.b16 %v440, %v438
    %v515 = vpack.c.b16 %v443, %v441
    %v516 = vpack.c.b16 %v444, %v442
    %v517 = vpack.c.b16 %v447, %v445
    %v518 = vpack.c.b16 %v448, %v446
    %v519 = vpack.c.b16 %v451, %v449
    %v520 = vpack.c.b16 %v452, %v450
    %v521 = vpack.c.b16 %v455, %v453
    %v522 = vpack.c.b16 %v456, %v454
    %v523 = vpack.c.b16 %v459, %v457
    %v524 = vpack.c.b16 %v460, %v458
    %589 = vmatprep.subr.bf16.mxu0 %v462
    %590 = vmatpush1.bf16.msra.mxu0 %v461
    %591 = vmatprep.subr.bf16.mxu0 %v464
    %592 = vmatpush1.bf16.msra.mxu0 %v463
    %593 = vmatprep.subr.bf16.mxu0 %v466
    %594 = vmatpush1.bf16.msra.mxu0 %v465
    %595 = vmatprep.subr.bf16.mxu0 %v468
    %596 = vmatpush1.bf16.msra.mxu0 %v467
    %597 = vmatprep.subr.bf16.mxu0 %v470
    %598 = vmatpush1.bf16.msra.mxu0 %v469
    %599 = vmatprep.subr.bf16.mxu0 %v472
    %600 = vmatpush1.bf16.msra.mxu0 %v471
    %601 = vmatprep.subr.bf16.mxu0 %v474
    %602 = vmatpush1.bf16.msra.mxu0 %v473
    %603 = vmatprep.subr.bf16.mxu0 %v476
    %604 = vmatpush1.bf16.msra.mxu0 %v475
    %605 = vmatprep.subr.bf16.mxu0 %v478
    %606 = vmatpush1.bf16.msra.mxu0 %v477
    %607 = vmatprep.subr.bf16.mxu0 %v480
    %608 = vmatpush1.bf16.msra.mxu0 %v479
    %609 = vmatprep.subr.bf16.mxu0 %v482
    %610 = vmatpush1.bf16.msra.mxu0 %v481
    %611 = vmatprep.subr.bf16.mxu0 %v484
    %612 = vmatpush1.bf16.msra.mxu0 %v483
    %613 = vmatprep.subr.bf16.mxu0 %v486
    %614 = vmatpush1.bf16.msra.mxu0 %v485
    %615 = vmatprep.subr.bf16.mxu0 %v488
    %616 = vmatpush1.bf16.msra.mxu0 %v487
    %617 = vmatprep.subr.bf16.mxu0 %v490
    %618 = vmatpush1.bf16.msra.mxu0 %v489
    %619 = vmatprep.subr.bf16.mxu0 %v492
    %620 = vmatpush1.bf16.msra.mxu0 %v491
    %621 = vmatprep.mubr.bf16.mxu0 %v262
    %622 = vmatmul.mubr.bf16.gmra.mrb[0].mxu0 %v255
    %v623 = vpop.f32.mrb[0].mxu0
    %v624 = vadd.f32 %v239, %v623
    %v625 = vpop.f32.mrb[0].mxu0
    %v626 = vadd.f32 %v239, %v625
    %v627 = vpop.f32.mrb[0].mxu0
    %v628 = vpop.f32.mrb[0].mxu0
    %629 = vdwg.mxu0
    %630 = vmatprep.subr.bf16.mxu0 %v494
    %631 = vmatpush1.bf16.msra.mxu0 %v493
    %632 = vmatprep.subr.bf16.mxu0 %v496
    %633 = vmatpush1.bf16.msra.mxu0 %v495
    %634 = vmatprep.subr.bf16.mxu0 %v498
    %635 = vmatpush1.bf16.msra.mxu0 %v497
    %636 = vmatprep.subr.bf16.mxu0 %v500
    %637 = vmatpush1.bf16.msra.mxu0 %v499
    %638 = vmatprep.subr.bf16.mxu0 %v502
    %639 = vmatpush1.bf16.msra.mxu0 %v501
    %640 = vmatprep.subr.bf16.mxu0 %v504
    %641 = vmatpush1.bf16.msra.mxu0 %v503
    %642 = vmatprep.subr.bf16.mxu0 %v506
    %643 = vmatpush1.bf16.msra.mxu0 %v505
    %644 = vmatprep.subr.bf16.mxu0 %v508
    %645 = vmatpush1.bf16.msra.mxu0 %v507
    %646 = vmatprep.subr.bf16.mxu0 %v510
    %647 = vmatpush1.bf16.msra.mxu0 %v509
    %648 = vmatprep.subr.bf16.mxu0 %v512
    %649 = vmatpush1.bf16.msra.mxu0 %v511
    %650 = vmatprep.subr.bf16.mxu0 %v514
    %651 = vmatpush1.bf16.msra.mxu0 %v513
    %652 = vmatprep.subr.bf16.mxu0 %v516
    %653 = vmatpush1.bf16.msra.mxu0 %v515
    %654 = vmatprep.subr.bf16.mxu0 %v518
    %655 = vmatpush1.bf16.msra.mxu0 %v517
    %656 = vmatprep.subr.bf16.mxu0 %v520
    %657 = vmatpush1.bf16.msra.mxu0 %v519
    %658 = vmatprep.subr.bf16.mxu0 %v522
    %659 = vmatpush1.bf16.msra.mxu0 %v521
    %660 = vmatprep.subr.bf16.mxu0 %v524
    %661 = vmatpush1.bf16.msra.mxu0 %v523
    %662 = vmatprep.mubr.bf16.mxu0 %v264
    %663 = vmatmul.mubr.bf16.gmra.mrb[0].mxu0 %v263
    %v664 = vpop.f32.mrb[0].mxu0
    %v665 = vadd.f32 %v624, %v664
    %v666 = vpop.f32.mrb[0].mxu0
    %v667 = vadd.f32 %v626, %v666
    %v668 = vpop.f32.mrb[0].mxu0
    %v669 = vpop.f32.mrb[0].mxu0
    %670 = vdwg.mxu0
    %v671 = vxor.u32 %v665, 2147483648
    %v672 = vxor.u32 %v667, 2147483648
    %v673 = vmul.f32 %v671, 1.442695
    %v674 = vpow.pop %v673
    %v675 = vmul.f32 %v672, 1.442695
    %v676 = vpow.pop %v675
    %v677 = vadd.f32 %v674, 1.0
    %v678 = vadd.f32 %v676, 1.0
    %v679 = vrcp.pop %v677
    %v680 = vmul.f32 1.0, %v679
    %v681 = vrcp.pop %v678
    %v682 = vmul.f32 1.0, %v681
    %v685 = vcombine.low %v680, %v682
    %v687 = vunpack.c.l.s4 1983009808
    %v688 = vunpack.c.0.s8 %v687
    %v689 = vlaneseq
    %v690 = vshrl.u32 %v689, 7
    %v691 = vsub.s32 %v688, %v690
    %v692 = vrot.slane %v685, %v691
    %694 = vst [vmem:[#allocation9] sm:$0xf] %v692
    // Predicated region
    $region26: #{tpu_custom_call.1} parent=1 // pred_check
      _
    $region27: #{tpu_custom_call.1} parent=1 // pred_check_branch
      %696 = sbr.rel (0) target = $region29
    $region28: #{tpu_custom_call.1} parent=1 // pred_region
      %s698 = ssub.s32 64, 64
      %699 = vsyncadd [#allocation6], %s698
      %s701 = sshll.u32 [#allocation9], 4
      %s702 = int_to_ptr.vmem [resolvable:$true] %s701
      %704 = dma.vmem_to_hbm [thread:$0]  %s702, 64, %s3, [#allocation6]
    $region29: #{tpu_custom_call.1} parent=1 // pred_fallthru
      _
    // Predicated region
    $region30: #{tpu_custom_call.1} parent=1 // pred_check
      _
    $region31: #{tpu_custom_call.1} parent=1 // pred_check_branch
      %706 = sbr.rel (0) target = $region33
    $region32: #{tpu_custom_call.1} parent=1 // pred_region
      %707 = dma.done [#allocation6], 64
    $region33: #{tpu_custom_call.1} parent=1 // pred_fallthru
      _
    %708 = vsyncpa [#allocation5], 1
    %709 = vsyncpa [#allocation8], 1
    %710 = vsyncpa [#allocation6], 1

</llo_original>
